<compile_context>
chip_gen: v7x
topology: tpu7x:2x2x1
jax: 0.10.0
libtpu: 0.0.40
codegen_flags: <defaults>
</compile_context>

<pallas_src>
import functools

import jax
import jax.numpy as jnp
from jax.experimental import pallas as pl
from jax.experimental.pallas import tpu as pltpu


def _round_up(x, m):
    return ((x + m - 1) // m) * m


def _cdiv(a, b):
    return -(-a // b)


def _largest_divisor_tile(padded, pref, granule=128):
    """Largest multiple of `granule` that divides `padded` and is <= pref.

    Prefers multiples of 256 (fills the 2x256^2 MXU on v6e/v7x) unless that
    would halve the tile.
    """
    pref = max(granule, min(pref, padded))
    best, best256 = granule, 0
    d = granule
    while d <= pref:
        if padded % d == 0:
            best = d
            if d % 256 == 0:
                best256 = d
        d += granule
    return best256 if (best256 and 2 * best256 >= best) else best


# --------------------------------------------------------------------------
# Path A: weight-resident.  W/bias are VMEM-resident (constant index maps),
# x streams in (tm, H) row tiles, single K step -> no accumulator scratch.
# --------------------------------------------------------------------------
def _resident_kernel(x_ref, w_ref, b_ref, o_ref, *, compute_dtype):
    x = x_ref[...].astype(compute_dtype)          # cast (if any) is in-kernel
    acc = jnp.dot(x, w_ref[...], preferred_element_type=jnp.float32)
    o_ref[...] = (acc + b_ref[...]).astype(o_ref.dtype)


# --------------------------------------------------------------------------
# Path B: 3-D tiled-accumulate fallback for weights too large to hold in VMEM.
# --------------------------------------------------------------------------
def _tiled_kernel_acc(x_ref, w_ref, b_ref, o_ref, acc_ref, *, compute_dtype):
    k = pl.program_id(2)

    @pl.when(k == 0)
    def _():
        acc_ref[...] = jnp.zeros_like(acc_ref)

    acc_ref[...] += jnp.dot(
        x_ref[...].astype(compute_dtype), w_ref[...],
        preferred_element_type=jnp.float32)

    @pl.when(k == pl.num_programs(2) - 1)
    def _():
        o_ref[...] = (acc_ref[...] + b_ref[...]).astype(o_ref.dtype)


def _tiled_kernel_f32_out(x_ref, w_ref, b_ref, o_ref, *, compute_dtype):
    # f32 output: accumulate straight into o_ref (its block index ignores k,
    # so it stays VMEM-resident across the K loop) -> no scratch, no finalize
    # copy.
    k = pl.program_id(2)

    @pl.when(k == 0)
    def _():
        o_ref[...] = jnp.zeros_like(o_ref)

    o_ref[...] += jnp.dot(
        x_ref[...].astype(compute_dtype), w_ref[...],
        preferred_element_type=jnp.float32)

    @pl.when(k == pl.num_programs(2) - 1)
    def _():
        o_ref[...] += b_ref[...]


@functools.partial(
    jax.jit,
    static_argnames=("compute_dtype", "out_dtype", "tm", "tn", "tk",
                     "vmem_budget_bytes"),
)
def sequence_wise_linear(x, w, b, *, compute_dtype=None, out_dtype=None,
                         tm=1024, tn=1024, tk=1024,
                         vmem_budget_bytes=40 * 1024 * 1024):
    """SequenceWise(nn.Linear) forward: (T, N, H) x (H, H_out) + b -> (T, N, H_out).

    compute_dtype defaults to x.dtype (parity with the PyTorch module); pass
    jnp.bfloat16 explicitly to opt into bf16 MXU compute (f32 accumulation).
    """
    t, n, h = x.shape
    h_out = w.shape[1]
    m = t * n
    out_dtype = jnp.dtype(out_dtype) if out_dtype is not None else jnp.dtype(x.dtype)
    cd = jnp.dtype(compute_dtype) if compute_dtype is not None else jnp.dtype(x.dtype)

    x_item = jnp.dtype(x.dtype).itemsize
    cd_item = cd.itemsize
    out_item = out_dtype.itemsize

    # (T,N,H)->(T*N,H) is a free view; x stays in its original dtype in HBM.
    x2d = x.reshape(m, h)

    # Lane-pad H_out to a multiple of 128 only (lane-dense output stores,
    # filled MXU columns).  W / bias are tiny and read once, so the host-side
    # cast + pad is negligible.  H is NOT padded here.
    n_out_p = _round_up(h_out, 128)
    w2d = w.astype(cd)
    b2d = b.astype(jnp.float32).reshape(1, h_out)
    if n_out_p != h_out:
        w2d = jnp.pad(w2d, ((0, 0), (0, n_out_p - h_out)))
        b2d = jnp.pad(b2d, ((0, 0), (0, n_out_p - h_out)))

    sub = 8 if (x_item == 4 and out_item == 4) else 16

    w_bytes = h * n_out_p * cd_item
    b_bytes = n_out_p * 4
    per_row = 2 * (h * x_item + n_out_p * out_item)   # dbl-buffered x + out row

    resident_ok = (w_bytes + b_bytes + 64 * per_row) <= vmem_budget_bytes

    if resident_ok:
        # ----------------------- Path A: weight-resident --------------------
        tm_budget = (vmem_budget_bytes - w_bytes - b_bytes) // per_row
        if m <= sub:
            tm_a = m
        else:
            tm_a = max(sub, (min(tm, tm_budget, m) // sub) * sub)
        n_i = _cdiv(m, tm_a)
        if n_i < 2 and m > sub:
            # Give both TensorCores work on v7x (the row axis is "parallel").
            tm_a = _round_up(_cdiv(m, 2), sub)
            n_i = _cdiv(m, tm_a)

        footprint = w_bytes + 2 * b_bytes + tm_a * per_row
        vmem_limit = int(max(32 << 20, footprint + (8 << 20)))

        cost = pl.CostEstimate(
            flops=2 * m * h * n_out_p,
            transcendentals=0,
            bytes_accessed=(m * h * x_item            # x read once
                            + h * n_out_p * cd_item   # W read once
                            + n_out_p * 4             # bias read once
                            + m * n_out_p * out_item),
        )

        out2d = pl.pallas_call(
            functools.partial(_resident_kernel, compute_dtype=cd),
            out_shape=jax.ShapeDtypeStruct((m, n_out_p), out_dtype),
            grid_spec=pltpu.PrefetchScalarGridSpec(
                num_scalar_prefetch=0,
                grid=(n_i,),
                in_specs=[
                    pl.BlockSpec((tm_a, h), lambda i: (i, 0)),      # x row tile
                    pl.BlockSpec((h, n_out_p), lambda i: (0, 0)),   # resident W
                    pl.BlockSpec((1, n_out_p), lambda i: (0, 0)),   # resident bias
                ],
                out_specs=pl.BlockSpec((tm_a, n_out_p), lambda i: (i, 0)),
            ),
            compiler_params=pltpu.CompilerParams(
                dimension_semantics=("parallel",),
                vmem_limit_bytes=vmem_limit,
            ),
            cost_estimate=cost,
        )(x2d, w2d, b2d)
    else:
        # ------------------ Path B: 3-D tiled fallback (huge W) -------------
        hp = _round_up(h, 128)
        tk_b = _largest_divisor_tile(hp, tk)
        tn_b = _largest_divisor_tile(n_out_p, tn)
        # K is blocked here, so x must be zero-padded along H (zeros along K
        # contribute nothing to the accumulation).
        x2d_b = x2d if hp == h else jnp.pad(x2d, ((0, 0), (0, hp - h)))
        w2d_b = w2d if hp == h else jnp.pad(w2d, ((0, hp - h), (0, 0)))

        direct_f32 = out_dtype == jnp.dtype(jnp.float32)
        fixed = 2 * (tk_b * tn_b * cd_item + tn_b * 4)
        per_row_b = (2 * (tk_b * x_item + tn_b * out_item)
                     + (0 if direct_f32 else tn_b * 4))
        tm_budget_b = (vmem_budget_bytes - fixed) // per_row_b
        if m <= sub:
            tm_b = m
        else:
            tm_b = max(sub, (min(tm, tm_budget_b, m) // sub) * sub)

        n_i, n_j, n_k = _cdiv(m, tm_b), n_out_p // tn_b, hp // tk_b
        grid = (n_i, n_j, n_k)

        footprint = fixed + tm_b * per_row_b
        vmem_limit = int(max(32 << 20, footprint + (8 << 20)))

        cost = pl.CostEstimate(
            flops=2 * m * hp * n_out_p,
            transcendentals=0,
            bytes_accessed=(n_j * m * hp * x_item            # x refetched per j
                            + n_i * hp * n_out_p * cd_item   # W refetched per i
                            + n_i * n_out_p * 4
                            + m * n_out_p * out_item),
        )

        if direct_f32:
            kernel = functools.partial(_tiled_kernel_f32_out, compute_dtype=cd)
            scratch = []
        else:
            kernel = functools.partial(_tiled_kernel_acc, compute_dtype=cd)
            scratch = [pltpu.VMEM((tm_b, tn_b), jnp.float32)]

        out2d = pl.pallas_call(
            kernel,
            out_shape=jax.ShapeDtypeStruct((m, n_out_p), out_dtype),
            grid_spec=pltpu.PrefetchScalarGridSpec(
                num_scalar_prefetch=0,
                grid=grid,
                in_specs=[
                    pl.BlockSpec((tm_b, tk_b), lambda i, j, k: (i, k)),
                    pl.BlockSpec((tk_b, tn_b), lambda i, j, k: (k, j)),
                    pl.BlockSpec((1, tn_b), lambda i, j, k: (0, j)),
                ],
                out_specs=pl.BlockSpec((tm_b, tn_b), lambda i, j, k: (i, j)),
                scratch_shapes=scratch,
            ),
            compiler_params=pltpu.CompilerParams(
                dimension_semantics=("parallel", "parallel", "arbitrary"),
                vmem_limit_bytes=vmem_limit,
            ),
            cost_estimate=cost,
        )(x2d_b, w2d_b, b2d)

    if n_out_p != h_out:
        out2d = out2d[:, :h_out]
    return out2d.reshape(t, n, h_out)


if __name__ == "__main__":
    # Small deterministic shapes consistent with SequenceWise(Linear).
    T, N, H, H_OUT = 8, 2, 32, 32
    key = jax.random.PRNGKey(0)
    kx, kw, kb = jax.random.split(key, 3)
    x = jax.random.normal(kx, (T, N, H), dtype=jnp.float32)
    w = jax.random.normal(kw, (H, H_OUT), dtype=jnp.float32) * (1.0 / (H ** 0.5))
    b = jax.random.normal(kb, (H_OUT,), dtype=jnp.float32) * 0.1

    ref = (jnp.dot(x.reshape(T * N, H), w,
                   precision=jax.lax.Precision.HIGHEST) + b).reshape(T, N, H_OUT)

    # 1) Default path: f32 compute (PyTorch parity), weight-resident (Path A).
    y = jax.block_until_ready(sequence_wise_linear(x, w, b))
    assert y.shape == (T, N, H_OUT)
    assert jnp.allclose(y, ref, atol=5e-2, rtol=5e-2)

    # 2) Explicit bf16 opt-in (bf16 MXU inputs, f32 accumulation).
    y_bf = jax.block_until_ready(
        sequence_wise_linear(x, w, b, compute_dtype=jnp.bfloat16))
    ref_bf = (jnp.dot(x.reshape(T * N, H).astype(jnp.bfloat16),
                      w.astype(jnp.bfloat16),
                      preferred_element_type=jnp.float32) + b
              ).reshape(T, N, H_OUT)
    assert jnp.allclose(y_bf, ref_bf, atol=1e-2, rtol=1e-2)
    assert jnp.allclose(y_bf, ref, atol=5e-2, rtol=5e-2)

    # 3) H_out not a multiple of 128 -> lane-padded W/bias + output slice.
    y3 = jax.block_until_ready(sequence_wise_linear(x, w[:, :20], b[:20]))
    assert y3.shape == (T, N, 20)
    assert jnp.allclose(y3, ref[..., :20], atol=5e-2, rtol=5e-2)

    # 4) Force the 3-D tiled fallback (huge-weight path) with a tiny budget:
    #    covers the direct-f32-accumulate variant ...
    y4 = jax.block_until_ready(
        sequence_wise_linear(x, w, b, vmem_budget_bytes=64 * 1024))
    assert jnp.allclose(y4, ref, atol=5e-2, rtol=5e-2)

    #    ... and the f32-scratch + narrow-output variant.
    y5 = jax.block_until_ready(
        sequence_wise_linear(x, w, b, compute_dtype=jnp.bfloat16,
                             out_dtype=jnp.bfloat16,
                             vmem_budget_bytes=64 * 1024))
    assert jnp.allclose(y5.astype(jnp.float32), ref, atol=6e-2, rtol=6e-2)

    print("KERNEL_OK")
</pallas_src>

<mosaic_0001>
module attributes {stable_mosaic.version = 11 : i64} {
  func.func @_resident_kernel(%arg0: i32, %arg1: memref<8x32xf32, #tpu.memory_space<vmem>>, %arg2: memref<32x128xf32, #tpu.memory_space<vmem>>, %arg3: memref<1x128xf32, #tpu.memory_space<vmem>>, %arg4: memref<8x128xf32, #tpu.memory_space<vmem>>) attributes {dimension_semantics = [#tpu.dimension_semantics<parallel>], iteration_bounds = array<i64: 2>, scalar_prefetch = 0 : i64, scratch_operands = 0 : i64, tpu.core_type = #tpu.core_type<tc>, window_params = [{transform_indices = @transform_0, window_bounds = array<i64: 8, 32>}, {pipeline_mode = #tpu.pipeline_mode<synchronous>, transform_indices = @transform_1, window_bounds = array<i64: 32, 128>}, {pipeline_mode = #tpu.pipeline_mode<synchronous>, transform_indices = @transform_2, window_bounds = array<i64: 1, 128>}, {transform_indices = @transform_3, window_bounds = array<i64: 8, 128>}]} {
    %c0 = arith.constant 0 : index
    %c0_0 = arith.constant 0 : index
    %0 = vector.load %arg1[%c0, %c0_0] : memref<8x32xf32, #tpu.memory_space<vmem>>, vector<8x32xf32>
    %c0_1 = arith.constant 0 : index
    %c0_2 = arith.constant 0 : index
    %1 = vector.load %arg2[%c0_1, %c0_2] : memref<32x128xf32, #tpu.memory_space<vmem>>, vector<32x128xf32>
    %cst = arith.constant dense<0.000000e+00> : vector<8x128xf32>
    %2 = tpu.matmul %0, %1, %cst {dimension_numbers = #tpu.dot_dimension_numbers<[1], [0], [0], [1], [0, 0, 1, 1], [], []>} : vector<8x32xf32>, vector<32x128xf32>, vector<8x128xf32> -> vector<8x128xf32>
    %c0_3 = arith.constant 0 : index
    %c0_4 = arith.constant 0 : index
    %3 = vector.load %arg3[%c0_3, %c0_4] : memref<1x128xf32, #tpu.memory_space<vmem>>, vector<1x128xf32>
    %4 = vector.broadcast %3 : vector<1x128xf32> to vector<8x128xf32>
    %5 = arith.addf %2, %4 : vector<8x128xf32>
    %c0_5 = arith.constant 0 : index
    %c0_6 = arith.constant 0 : index
    %6 = vector.load %arg4[%c0_5, %c0_6] : memref<8x128xf32, #tpu.memory_space<vmem>>, vector<8x128xf32>
    tpu.vector_store %arg4[%c0_5, %c0_6], %5 {strides = array<i32>} : memref<8x128xf32, #tpu.memory_space<vmem>>, vector<8x128xf32>,
    return
  }
  func.func @transform_0(%arg0: i32) -> (i32, i32) {
    %c0_i32 = arith.constant 0 : i32
    %c0_i32_0 = arith.constant 0 : i32
    return %arg0, %c0_i32 : i32, i32
  }
  func.func @transform_1(%arg0: i32) -> (i32, i32) {
    %c0_i32 = arith.constant 0 : i32
    %c0_i32_0 = arith.constant 0 : i32
    %c0_i32_1 = arith.constant 0 : i32
    return %c0_i32, %c0_i32_0 : i32, i32
  }
  func.func @transform_2(%arg0: i32) -> (i32, i32) {
    %c0_i32 = arith.constant 0 : i32
    %c0_i32_0 = arith.constant 0 : i32
    %c0_i32_1 = arith.constant 0 : i32
    return %c0_i32, %c0_i32_0 : i32, i32
  }
  func.func @transform_3(%arg0: i32) -> (i32, i32) {
    %c0_i32 = arith.constant 0 : i32
    %c0_i32_0 = arith.constant 0 : i32
    return %arg0, %c0_i32 : i32, i32
  }
}

</mosaic_0001>

<llo_original>
// kernel: sequence_wise_linear.1
$region0: #{sequence_wise_linear.1}
  #allocation0 [shape = 'u32[]', space=smem, size = 0x4, offset = 0x4, fixed_abs, tag = 'smem constant byte address 0x4 - core index']
  #allocation1 [shape = 'u32[144,128]{1,0:T(1,128)}', space=vmem, size = 0x12000, scoped, tag = 'internal scratch']
  %s0 = inlined_call_operand.vmem [shape: f32[16,32], index: 0, kind: input, shape index: {}]
  %s1 = inlined_call_operand.vmem [shape: f32[32,128], index: 1, kind: input, shape index: {}]
  %s2 = inlined_call_operand.vmem [shape: f32[1,128], index: 2, kind: input, shape index: {}]
  %s3 = inlined_call_operand.hbm [shape: f32[16,128], index: 3, kind: output, shape index: {}]
  %s4 = sld [smem:[#allocation0]]
  $region45: #{sequence_wise_linear.1} parent=0
    _
  %s6 = ssub.s32 1, %s4
  %s7 = scalar_select 0, %s6, %s4
  $region1: #{sequence_wise_linear.1} parent=0
    #allocation2 [shape = 'u8[8192]{0}', space=vmem, size = 0x2000, scoped, tag = 'output window, operand 0']
    #allocation3 [shape = 's32[2]{0}', space=sflag, size = 0x8, scoped, tag = 'scoped memory for sequence_wise_linear.1']
    %8 = vsyncpa [#allocation3], 0
    %s9 = scalar_lea.sflag [#allocation3], 1
    %10 = vsyncpa %s9, 0
    loop: start=0, step=1, limit=4
    $region2: #{sequence_wise_linear.1} parent=1 // loop_pre_header
      _
    $region3: #{sequence_wise_linear.1} parent=1 // loop_header
      %s12 = sphi 0, %s16
      %p13 = scmp.ge.s32.totalorder %s12, 4
      %s22 = sphi 0, %s24
      %s25 = sphi 0, %s22
      %s26 = sphi 0, %s25
      %s42 = sphi 0, %s26
      %s46 = sphi 0, %s46
      %s48 = sphi 0, %s46
      %s49 = sphi 0, %s48
      %s63 = sphi 0, %s49
      %s67 = sphi 0, %s67
      %s69 = sphi 0, %s67
      %s70 = sphi 0, %s69
      %s84 = sphi 0, %s70
      %s90 = sphi 0, %s92
      %s93 = sphi 0, %s90
      %s94 = sphi 0, %s93
      %s110 = sphi 0, %s94
    $region4: #{sequence_wise_linear.1} parent=1 // loop_header_branch
      %15 = sbr.rel (%p13) target = $region8
    $region5: #{sequence_wise_linear.1} parent=1 // loop_body
      %s17 = ssub.s32 %s12, 1
      %s18 = ssub.s32 %s12, 2
      %s19 = sadd.s32 %s12, 1
      %s20 = ssub.s32 %s12, %s19
      %p21 = scmp.eq.s32.totalorder %s20, 0
      %s23 = sadd.s32 %s22, 1
      %s24 = scalar_select %p21, %s22, %s23
      %p27 = pneg %p21
      %p28 = scmp.eq.s32.totalorder %s12, 1
      %p29 = por %p27, %p28
      %p30 = scmp.ne.s32.totalorder %s22, %s25
      %p31 = scmp.eq.s32.totalorder %s12, 0
      %p32 = por %p30, %p31
      %p33 = scmp.ne.s32.totalorder %s22, %s25
      %p34 = scmp.eq.s32.totalorder %s17, 1
      %p35 = por %p33, %p34
      %p36 = scmp.ne.s32.totalorder %s25, %s26
      %p37 = scmp.eq.s32.totalorder %s17, 0
      %p38 = por %p36, %p37
      %p39 = scmp.ne.s32.totalorder %s25, %s26
      %p40 = scmp.eq.s32.totalorder %s18, 1
      %p41 = por %p39, %p40
      %p43 = scmp.ne.s32.totalorder %s26, %s42
      %p44 = scmp.eq.s32.totalorder %s18, 0
      %p45 = por %p43, %p44
      %s47 = sadd.s32 %s46, 1
      %p50 = scmp.eq.s32.totalorder %s12, 1
      %p51 = scmp.ne.s32.totalorder %s46, %s48
      %p52 = scmp.eq.s32.totalorder %s12, 0
      %p53 = por %p51, %p52
      %p54 = scmp.ne.s32.totalorder %s46, %s48
      %p55 = scmp.eq.s32.totalorder %s17, 1
      %p56 = por %p54, %p55
      %p57 = scmp.ne.s32.totalorder %s48, %s49
      %p58 = scmp.eq.s32.totalorder %s17, 0
      %p59 = por %p57, %p58
      %p60 = scmp.ne.s32.totalorder %s48, %s49
      %p61 = scmp.eq.s32.totalorder %s18, 1
      %p62 = por %p60, %p61
      %p64 = scmp.ne.s32.totalorder %s49, %s63
      %p65 = scmp.eq.s32.totalorder %s18, 0
      %p66 = por %p64, %p65
      %s68 = sadd.s32 %s67, 1
      %p71 = scmp.eq.s32.totalorder %s12, 1
      %p72 = scmp.ne.s32.totalorder %s67, %s69
      %p73 = scmp.eq.s32.totalorder %s12, 0
      %p74 = por %p72, %p73
      %p75 = scmp.ne.s32.totalorder %s67, %s69
      %p76 = scmp.eq.s32.totalorder %s17, 1
      %p77 = por %p75, %p76
      %p78 = scmp.ne.s32.totalorder %s69, %s70
      %p79 = scmp.eq.s32.totalorder %s17, 0
      %p80 = por %p78, %p79
      %p81 = scmp.ne.s32.totalorder %s69, %s70
      %p82 = scmp.eq.s32.totalorder %s18, 1
      %p83 = por %p81, %p82
      %p85 = scmp.ne.s32.totalorder %s70, %s84
      %p86 = scmp.eq.s32.totalorder %s18, 0
      %p87 = por %p85, %p86
      %s88 = ssub.s32 %s12, %s19
      %p89 = scmp.eq.s32.totalorder %s88, 0
      %s91 = sadd.s32 %s90, 1
      %s92 = scalar_select %p89, %s90, %s91
      %p95 = pneg %p89
      %p96 = scmp.eq.s32.totalorder %s12, 1
      %p97 = por %p95, %p96
      %p98 = scmp.ne.s32.totalorder %s90, %s93
      %p99 = scmp.eq.s32.totalorder %s12, 0
      %p100 = por %p98, %p99
      %p101 = scmp.ne.s32.totalorder %s90, %s93
      %p102 = scmp.eq.s32.totalorder %s17, 1
      %p103 = por %p101, %p102
      %p104 = scmp.ne.s32.totalorder %s93, %s94
      %p105 = scmp.eq.s32.totalorder %s17, 0
      %p106 = por %p104, %p105
      %p107 = scmp.ne.s32.totalorder %s93, %s94
      %p108 = scmp.eq.s32.totalorder %s18, 1
      %p109 = por %p107, %p108
      %p111 = scmp.ne.s32.totalorder %s94, %s110
      %p112 = scmp.eq.s32.totalorder %s18, 0
      %p113 = por %p111, %p112
      %p114 = scmp.le.s32.totalorder 1, %s12
      %p115 = scmp.lt.s32.totalorder %s12, 3
      %p116 = pnand %p114, %p115
      %p117 = pneg %p116
      // Predicated region
      $region9: #{sequence_wise_linear.1} parent=5 // pred_check
        _
      $region10: #{sequence_wise_linear.1} parent=5 // pred_check_branch
        %119 = sbr.rel (%p116) target = $region12
      $region11: #{sequence_wise_linear.1} parent=5 // pred_region
        %s120 = ssub.s32 %s12, 1
        // Predicated region
        $region13: #{sequence_wise_linear.1} parent=11 // pred_check
          %p121 = pneg %p59
        $region14: #{sequence_wise_linear.1} parent=11 // pred_check_branch
          %123 = sbr.rel (%p121) target = $region16
        $region15: #{sequence_wise_linear.1} parent=11 // pred_region
          _
        $region16: #{sequence_wise_linear.1} parent=11 // pred_fallthru
          _
        // Predicated region
        $region17: #{sequence_wise_linear.1} parent=11 // pred_check
          %p124 = pneg %p80
        $region18: #{sequence_wise_linear.1} parent=11 // pred_check_branch
          %126 = sbr.rel (%p124) target = $region20
        $region19: #{sequence_wise_linear.1} parent=11 // pred_region
          _
        $region20: #{sequence_wise_linear.1} parent=11 // pred_fallthru
          _
      $region12: #{sequence_wise_linear.1} parent=5 // pred_fallthru
        _
      %p127 = scmp.lt.s32.totalorder %s12, 2
      // Predicated region
      $region21: #{sequence_wise_linear.1} parent=5 // pred_check
        %p128 = pneg %p127
      $region22: #{sequence_wise_linear.1} parent=5 // pred_check_branch
        %130 = sbr.rel (%p128) target = $region24
      $region23: #{sequence_wise_linear.1} parent=5 // pred_region
        // Predicated region
        $region25: #{sequence_wise_linear.1} parent=23 // pred_check
          %p131 = pneg %p32
        $region26: #{sequence_wise_linear.1} parent=23 // pred_check_branch
          %133 = sbr.rel (%p131) target = $region28
        $region27: #{sequence_wise_linear.1} parent=23 // pred_region
          %p134 = scmp.lt.s32.totalorder %s12, 1
          %s135 = scalar_select %p134, %s12, 1
          %s136 = smul.addr %s135, 8
          %s137 = scalar_lea.vmem %s0, %s136
        $region28: #{sequence_wise_linear.1} parent=23 // pred_fallthru
          _
      $region24: #{sequence_wise_linear.1} parent=5 // pred_fallthru
        _
      %p138 = scmp.le.s32.totalorder 1, %s12
      %p139 = scmp.lt.s32.totalorder %s12, 3
      %p140 = pnand %p138, %p139
      %p141 = pneg %p140
      // Predicated region
      $region29: #{sequence_wise_linear.1} parent=5 // pred_check
        _
      $region30: #{sequence_wise_linear.1} parent=5 // pred_check_branch
        %143 = sbr.rel (%p140) target = $region32
      $region31: #{sequence_wise_linear.1} parent=5 // pred_region
        %s144 = ssub.s32 %s12, 1
        %p145 = scmp.lt.s32.totalorder %s17, 1
        %s146 = scalar_select %p145, %s17, 1
        %s147 = smul.addr %s146, 8
        %s148 = scalar_lea.vmem %s0, %s147
        %p149 = pneg %p38
        %p150 = pneg %p35
        %p151 = pneg %p59
        %p152 = pneg %p56
        %p153 = pneg %p80
        %p154 = pneg %p77
        %p155 = pneg %p106
        %p156 = pneg %p103
        %s157 = sand.u32 %s93, 1
        %s158 = scalar_lea.sflag [#allocation3], %s157
        %s159 = sand.u32 %s93, 1
        %s160 = smul.addr %s159, 8
        %s161 = scalar_lea.vmem [#allocation2], %s160
        %p162 = scmp.lt.s32.totalorder %s17, 1
        %s163 = scalar_select %p162, %s17, 1
        %s164 = smul.addr %s163, 8
        %s165 = scalar_lea.vmem %s0, %s164
        %v166 = vld [vmem:[%s165] sm:$0xff]
        %v167 = vld [vmem:[%s1] sm:$0xff]
        %v168 = vld [vmem:[%s1 + $0x8] sm:$0xff]
        %v169 = vld [vmem:[%s1 + $0x10] sm:$0xff]
        %v170 = vld [vmem:[%s1 + $0x18] sm:$0xff]
        %v171 = vld [vmem:[%s2] sm:$0x1]
        %v173 = vlaneseq
        %v174 = vshrl.u32 %v173, 7
        %v175 = vsub.s32 0, %v174
        %v176 = vrot.slane %v171, %v175
        %vm178 = vcmask 261120
        %v180 = vsel %vm178, %v166, 0
        %182 = vmatprep.subr.mxu0 0.0
        %183 = vmatpush1.msra.mxu0 %v167
        %184 = vmatprep.subr.mxu0 0.0
        %185 = vmatpush1.msra.mxu0 %v168
        %186 = vmatprep.subr.mxu0 0.0
        %187 = vmatpush1.msra.mxu0 %v169
        %188 = vmatprep.subr.mxu0 0.0
        %189 = vmatpush1.msra.mxu0 %v170
        %190 = vmatprep.subr.mxu0 0.0
        %191 = vmatpush1.msra.mxu0 0.0
        %192 = vmatprep.subr.mxu0 0.0
        %193 = vmatpush1.msra.mxu0 0.0
        %194 = vmatprep.subr.mxu0 0.0
        %195 = vmatpush1.msra.mxu0 0.0
        %196 = vmatprep.subr.mxu0 0.0
        %197 = vmatpush1.msra.mxu0 0.0
        %198 = vmatprep.subr.mxu0 0.0
        %199 = vmatpush1.msra.mxu0 0.0
        %200 = vmatprep.subr.mxu0 0.0
        %201 = vmatpush1.msra.mxu0 0.0
        %202 = vmatprep.subr.mxu0 0.0
        %203 = vmatpush1.msra.mxu0 0.0
        %204 = vmatprep.subr.mxu0 0.0
        %205 = vmatpush1.msra.mxu0 0.0
        %206 = vmatprep.subr.mxu0 0.0
        %207 = vmatpush1.msra.mxu0 0.0
        %208 = vmatprep.subr.mxu0 0.0
        %209 = vmatpush1.msra.mxu0 0.0
        %210 = vmatprep.subr.mxu0 0.0
        %211 = vmatpush1.msra.mxu0 0.0
        %212 = vmatprep.subr.mxu0 0.0
        %213 = vmatpush1.msra.mxu0 0.0
        %214 = vmatprep.subr.mxu0 0.0
        %215 = vmatpush1.msra.mxu0 0.0
        %216 = vmatprep.subr.mxu0 0.0
        %217 = vmatpush1.msra.mxu0 0.0
        %218 = vmatprep.subr.mxu0 0.0
        %219 = vmatpush1.msra.mxu0 0.0
        %220 = vmatprep.subr.mxu0 0.0
        %221 = vmatpush1.msra.mxu0 0.0
        %222 = vmatprep.subr.mxu0 0.0
        %223 = vmatpush1.msra.mxu0 0.0
        %224 = vmatprep.subr.mxu0 0.0
        %225 = vmatpush1.msra.mxu0 0.0
        %226 = vmatprep.subr.mxu0 0.0
        %227 = vmatpush1.msra.mxu0 0.0
        %228 = vmatprep.subr.mxu0 0.0
        %229 = vmatpush1.msra.mxu0 0.0
        %230 = vmatprep.subr.mxu0 0.0
        %231 = vmatpush1.msra.mxu0 0.0
        %232 = vmatprep.subr.mxu0 0.0
        %233 = vmatpush1.msra.mxu0 0.0
        %234 = vmatprep.subr.mxu0 0.0
        %235 = vmatpush1.msra.mxu0 0.0
        %236 = vmatprep.subr.mxu0 0.0
        %237 = vmatpush1.msra.mxu0 0.0
        %238 = vmatprep.subr.mxu0 0.0
        %239 = vmatpush1.msra.mxu0 0.0
        %240 = vmatprep.subr.mxu0 0.0
        %241 = vmatpush1.msra.mxu0 0.0
        %242 = vmatprep.subr.mxu0 0.0
        %243 = vmatpush1.msra.mxu0 0.0
        %244 = vmatprep.subr.mxu0 0.0
        %245 = vmatpush1.msra.mxu0 0.0
        %246 = vmatprep.mubr.f32.mxu0 0.0
        %247 = vmatmul.mubr.f32.gmra.mrb[0].mxu0 %v180
        %v248 = vpop.f32.mrb[0].mxu0
        %v249 = vadd.f32 %v176, %v248
        %v250 = vpop.f32.mrb[0].mxu0
        %251 = vdwg.mxu0
        %252 = vst [vmem:[%s161] sm:$0xff] %v249
        %s253 = sand.u32 %s93, 1
        %s254 = scalar_lea.sflag [#allocation3], %s253
        %s255 = sand.u32 %s93, 1
        %s256 = smul.addr %s255, 8
        %s257 = scalar_lea.vmem [#allocation2], %s256
        // Predicated region
        $region33: #{sequence_wise_linear.1} parent=31 // pred_check
          %p258 = pneg %p103
        $region34: #{sequence_wise_linear.1} parent=31 // pred_check_branch
          %260 = sbr.rel (%p258) target = $region36
        $region35: #{sequence_wise_linear.1} parent=31 // pred_region
          %s262 = ssub.s32 128, 128
          %263 = vsyncadd %s254, %s262
          %s264 = smul.addr %s17, 128
          %s265 = scalar_lea.hbm %s3, %s264
          %s267 = sshll.u32 %s257, 4
          %s268 = int_to_ptr.vmem [resolvable:$true] %s267
          %270 = dma.vmem_to_hbm [thread:$0]  %s268, 128, %s265, %s254
        $region36: #{sequence_wise_linear.1} parent=31 // pred_fallthru
          _
      $region32: #{sequence_wise_linear.1} parent=5 // pred_fallthru
        _
      %p271 = scmp.le.s32.totalorder 2, %s12
      // Predicated region
      $region37: #{sequence_wise_linear.1} parent=5 // pred_check
        %p272 = pneg %p271
      $region38: #{sequence_wise_linear.1} parent=5 // pred_check_branch
        %274 = sbr.rel (%p272) target = $region40
      $region39: #{sequence_wise_linear.1} parent=5 // pred_region
        %s275 = ssub.s32 %s12, 2
        // Predicated region
        $region41: #{sequence_wise_linear.1} parent=39 // pred_check
          %p276 = pneg %p109
        $region42: #{sequence_wise_linear.1} parent=39 // pred_check_branch
          %278 = sbr.rel (%p276) target = $region44
        $region43: #{sequence_wise_linear.1} parent=39 // pred_region
          %s279 = sand.u32 %s94, 1
          %s280 = scalar_lea.sflag [#allocation3], %s279
          %s281 = sand.u32 %s94, 1
          %s282 = smul.addr %s281, 8
          %s283 = scalar_lea.vmem [#allocation2], %s282
          %284 = dma.done %s280, 128
        $region44: #{sequence_wise_linear.1} parent=39 // pred_fallthru
          _
      $region40: #{sequence_wise_linear.1} parent=5 // pred_fallthru
        _
    $region6: #{sequence_wise_linear.1} parent=1 // loop_footer
      %s16 = sadd.s32 1, %s12
    $region7: #{sequence_wise_linear.1} parent=1 // loop_footer_branch
      %11 = sbr.rel target = $region3
    $region8: #{sequence_wise_linear.1} parent=1 // loop_exit
      _
    %285 = vsyncpa [#allocation3], 1
    %s286 = scalar_lea.sflag [#allocation3], 1
    %287 = vsyncpa %s286, 1

</llo_original>
